<compile_context>
chip_gen: v7x
topology: tpu7x:2x2x1
jax: 0.10.0
libtpu: 0.0.40
codegen_flags: <defaults>
</compile_context>

<pallas_src>
import functools
import math

import jax
import jax.numpy as jnp
import numpy as np
from jax.experimental import pallas as pl
from jax.experimental.pallas import tpu as pltpu


def _patch_embed_kernel(x_ref, gamma_ref, beta_ref, o_ref, *, use_norm, eps, group):
    """One (batch, L-tile) block.

    x_ref:     (1, C, TL)                      block of (B, C, L)
    gamma_ref: (C, 1) float32
    beta_ref:  (C, 1) float32
    o_ref:     (1, TL // group, group * C)     lane-dense block of the output
    """
    x = x_ref[0]                                             # (C, TL)
    c = x.shape[0]

    if use_norm:
        xf = x.astype(jnp.float32)
        # One-pass LayerNorm statistics over C, reduced along the sublane axis
        # while the data is still in full-lane (C, TL) layout; the two sums
        # have no serial dependence, so the reductions overlap and no
        # full-size centered temporary is live before the reduction.
        inv_c = 1.0 / c
        s1 = jnp.sum(xf, axis=0, keepdims=True)              # (1, TL)
        s2 = jnp.sum(xf * xf, axis=0, keepdims=True)         # (1, TL)
        mean = s1 * inv_c
        var = jnp.maximum(s2 * inv_c - mean * mean, 0.0)     # biased, like nn.LayerNorm
        inv = jax.lax.rsqrt(var + eps)                       # EUP
        y = (xf - mean) * inv * gamma_ref[...] + beta_ref[...]
        y = y.astype(o_ref.dtype)
    else:
        y = x.astype(o_ref.dtype)

    # Transpose last, in the output dtype (halves XLU traffic for bf16 inputs).
    yt = jnp.transpose(y, (1, 0))                            # (TL, C)
    if group == 1:
        o_ref[0] = yt
    else:
        tl, cc = yt.shape
        # Regroup `group` consecutive rows into one lane-dense (multiple of
        # 128 lanes) row so the final stores are unmasked full-lane vst.
        # TODO(synk): switch this regroup to pltpu.einshape("c(mg)->m(gc)")
        # once its grouping grammar is confirmed to lower on all Mosaic builds.
        o_ref[0] = yt.reshape(tl // group, group * cc)


def _vmem_capacity_bytes():
    try:
        info = pltpu.get_tpu_info()
        return int(getattr(info, "vmem_capacity_bytes", 64 * 1024 * 1024))
    except Exception:
        return 64 * 1024 * 1024


def _generation_budgets():
    cap = _vmem_capacity_bytes()
    if cap >= 100 * 1024 * 1024:            # v5e / v6e: 128 MiB VMEM per core
        return 8 * 1024 * 1024, 96 * 1024 * 1024
    # v7x (64 MiB per TensorCore) or unknown: stay conservative.
    return 4 * 1024 * 1024, 48 * 1024 * 1024


def _choose_tile_l(L, C, in_itemsize, requested, blk_cap_bytes, min_l_tiles):
    if requested is not None:
        if requested != L and requested % 128 != 0:
            raise ValueError("tile_l must be a multiple of 128 or equal to L")
        return min(requested, L)
    if L <= 128:
        return L
    cap_elems = max(128, blk_cap_bytes // max(1, C * in_itemsize))
    if min_l_tiles > 1:
        cap_elems = min(cap_elems, max(128, -(-L // min_l_tiles)))
    if L <= cap_elems and min_l_tiles <= 1:
        return L                             # one contiguous block per batch
    t = min(L, cap_elems)
    t -= t % 128
    t = max(t, 128)
    tt = t
    while tt >= 128:                         # prefer an exact divisor
        if L % tt == 0:
            return tt
        tt -= 128
    return t                                 # cdiv grid; last tile is masked


def _choose_group(C, L, tile_l):
    g = math.gcd(C, 128)
    if C % 128 == 0 or g < 16:
        return 1                             # already lane-dense / regroup too wide
    group = 128 // g
    if L % tile_l != 0 or tile_l % group != 0 or L % group != 0:
        return 1                             # grouped path wants exact tiling
    tlo = tile_l // group
    if tile_l != L and tlo % 8 != 0:
        return 1
    return group


def _derive_vmem_limit(C, tile_l, itemsize, use_norm, hard_cap):
    elems = C * tile_l
    need = 4 * elems * itemsize                      # 2x in blocks + 2x out blocks
    need += (3 if use_norm else 1) * elems * 4       # live f32 temporaries
    need += 2 * 1024 * 1024                          # params + pipeline margin
    return int(min(hard_cap, max(32 * 1024 * 1024, need)))


@functools.lru_cache(maxsize=None)
def _get_impl(B, C, L, dtype_name, use_norm, eps, tile_l, group, vmem_limit):
    """Builds (once per config) a jitted (x2, gamma, beta) -> out callable."""
    dtype = jnp.dtype(dtype_name)
    n_l = pl.cdiv(L, tile_l)
    tlo = tile_l // group
    out_c = group * C
    out_l = L // group                               # == L when group == 1

    kernel = functools.partial(
        _patch_embed_kernel, use_norm=use_norm, eps=eps, group=group)

    cost = pl.CostEstimate(
        flops=(10 * B * L * C) if use_norm else 0,
        transcendentals=(B * L) if use_norm else 0,
        bytes_accessed=2 * B * L * C * dtype.itemsize + 8 * C,
    )

    call = pl.pallas_call(
        kernel,
        out_shape=jax.ShapeDtypeStruct((B, out_l, out_c), dtype),
        grid_spec=pl.GridSpec(
            grid=(B, n_l),
            in_specs=[
                pl.BlockSpec((1, C, tile_l), lambda b, l: (b, 0, l)),
                pl.BlockSpec((C, 1), lambda b, l: (0, 0)),
                pl.BlockSpec((C, 1), lambda b, l: (0, 0)),
            ],
            out_specs=pl.BlockSpec((1, tlo, out_c), lambda b, l: (b, l, 0)),
        ),
        compiler_params=pltpu.CompilerParams(
            # Both grid axes are independent -> shardable across v7x's 2 TCs.
            dimension_semantics=("parallel", "parallel"),
            vmem_limit_bytes=int(vmem_limit),
        ),
        cost_estimate=cost,
    )
    return jax.jit(call)


@functools.lru_cache(maxsize=None)
def _config_compiles(B, C, L, dtype_name, use_norm, eps, tile_l, group, vmem_limit):
    """Build-time probe: does the lane-dense (grouped) variant lower+compile?"""
    fn = _get_impl(B, C, L, dtype_name, use_norm, eps, tile_l, group, vmem_limit)
    x_s = jax.ShapeDtypeStruct((B, C, L), jnp.dtype(dtype_name))
    p_s = jax.ShapeDtypeStruct((C, 1), jnp.float32)
    try:
        fn.lower(x_s, p_s, p_s).compile()
        return True
    except Exception:
        return False


def patch_embed_3d(x, gamma, beta, *, use_norm=True, eps=1e-5, tile_l=None):
    """x: (B, C, D, H, W) -> (B, D*H*W, C), optional LayerNorm over C.

    gamma, beta: (C,) LayerNorm affine parameters (ignored if use_norm=False).
    """
    B, C, D, H, W = x.shape
    L = D * H * W
    x2 = x.reshape(B, C, L)                              # flatten(2): free
    gamma_c = jnp.asarray(gamma, jnp.float32).reshape(C, 1)
    beta_c = jnp.asarray(beta, jnp.float32).reshape(C, 1)

    blk_cap, vmem_hard = _generation_budgets()
    min_l_tiles = 2 if B < 2 else 1                      # keep both v7x TCs busy
    tile = _choose_tile_l(L, C, x2.dtype.itemsize, tile_l, blk_cap, min_l_tiles)
    group = _choose_group(C, L, tile)
    vmem_limit = _derive_vmem_limit(C, tile, x2.dtype.itemsize, use_norm, vmem_hard)

    cfg = (B, C, L, x2.dtype.name, bool(use_norm), float(eps), tile)
    if group > 1 and not _config_compiles(*cfg, group, vmem_limit):
        group = 1                                        # plain (masked-store) layout
    fn = _get_impl(*cfg, group, vmem_limit)
    out = fn(x2, gamma_c, beta_c)
    return out.reshape(B, L, C)


def _reference(x, gamma, beta, use_norm, eps=1e-5):
    B, C, D, H, W = x.shape
    y = x.reshape(B, C, D * H * W).transpose(0, 2, 1).astype(jnp.float32)
    if use_norm:
        mean = jnp.mean(y, axis=-1, keepdims=True)
        var = jnp.mean((y - mean) ** 2, axis=-1, keepdims=True)
        y = (y - mean) / jnp.sqrt(var + eps)
        y = y * gamma[None, None, :] + beta[None, None, :]
    return y.astype(x.dtype)


if __name__ == "__main__":
    # Small shapes consistent with the module: img_size=8, patch_size=1,
    # embed_dim (= input channel count) = 32, batch = 2.
    B, C, D, H, W = 2, 32, 8, 8, 8

    key = jax.random.PRNGKey(0)
    kx, kg, kb = jax.random.split(key, 3)
    x = jax.random.normal(kx, (B, C, D, H, W), dtype=jnp.float32)

    # Non-trivial (but deterministic) LayerNorm affine params so the affine
    # apply is actually validated.
    gamma = 1.0 + 0.05 * jax.random.normal(kg, (C,), dtype=jnp.float32)
    beta = 0.05 * jax.random.normal(kb, (C,), dtype=jnp.float32)

    # norm_layer=nn.LayerNorm path.
    out = patch_embed_3d(x, gamma, beta, use_norm=True)
    out = jax.block_until_ready(out)
    ref = _reference(x, gamma, beta, use_norm=True)
    np.testing.assert_allclose(np.asarray(out), np.asarray(ref), atol=1e-5, rtol=1e-5)
    assert out.shape == (B, D * H * W, C)

    # Default norm_layer=None path (pure flatten + transpose).
    out2 = jax.block_until_ready(patch_embed_3d(x, gamma, beta, use_norm=False))
    ref2 = _reference(x, gamma, beta, use_norm=False)
    np.testing.assert_allclose(np.asarray(out2), np.asarray(ref2), atol=1e-6, rtol=1e-6)

    print("KERNEL_OK")
</pallas_src>

<mosaic_0001>
module attributes {stable_mosaic.version = 11 : i64} {
  func.func @_patch_embed_kernel(%arg0: i32, %arg1: i32, %arg2: memref<1x32x512xf32, #tpu.memory_space<vmem>>, %arg3: memref<32x1xf32, #tpu.memory_space<vmem>>, %arg4: memref<32x1xf32, #tpu.memory_space<vmem>>, %arg5: memref<1x512x32xf32, #tpu.memory_space<vmem>>) attributes {dimension_semantics = [#tpu.dimension_semantics<parallel>, #tpu.dimension_semantics<parallel>], iteration_bounds = array<i64: 2, 1>, scalar_prefetch = 0 : i64, scratch_operands = 0 : i64, tpu.core_type = #tpu.core_type<tc>, window_params = [{transform_indices = @transform_0, window_bounds = array<i64: 1, 32, 512>}, {pipeline_mode = #tpu.pipeline_mode<synchronous>, transform_indices = @transform_1, window_bounds = array<i64: 32, 1>}, {pipeline_mode = #tpu.pipeline_mode<synchronous>, transform_indices = @transform_2, window_bounds = array<i64: 32, 1>}, {transform_indices = @transform_3, window_bounds = array<i64: 1, 512, 32>}]} {
    %c0 = arith.constant 0 : index
    %c0_0 = arith.constant 0 : index
    %c0_1 = arith.constant 0 : index
    %0 = vector.load %arg2[%c0, %c0_0, %c0_1] : memref<1x32x512xf32, #tpu.memory_space<vmem>>, vector<1x32x512xf32>
    %1 = vector.shape_cast %0 : vector<1x32x512xf32> to vector<32x512xf32>
    %cst = arith.constant dense<0.000000e+00> : vector<512xf32>
    %2 = vector.multi_reduction <add>, %1, %cst [0] : vector<32x512xf32> to vector<512xf32>
    %3 = vector.shape_cast %2 : vector<512xf32> to vector<1x512xf32>
    %4 = arith.mulf %1, %1 : vector<32x512xf32>
    %cst_2 = arith.constant dense<0.000000e+00> : vector<512xf32>
    %5 = vector.multi_reduction <add>, %4, %cst_2 [0] : vector<32x512xf32> to vector<512xf32>
    %6 = vector.shape_cast %5 : vector<512xf32> to vector<1x512xf32>
    %cst_3 = arith.constant 3.125000e-02 : f32
    %7 = vector.broadcast %cst_3 : f32 to vector<1x512xf32>
    %8 = arith.mulf %3, %7 : vector<1x512xf32>
    %cst_4 = arith.constant 3.125000e-02 : f32
    %9 = vector.broadcast %cst_4 : f32 to vector<1x512xf32>
    %10 = arith.mulf %6, %9 : vector<1x512xf32>
    %11 = arith.mulf %8, %8 : vector<1x512xf32>
    %12 = arith.subf %10, %11 : vector<1x512xf32>
    %cst_5 = arith.constant 0.000000e+00 : f32
    %13 = vector.broadcast %cst_5 : f32 to vector<1x512xf32>
    %14 = arith.maximumf %12, %13 : vector<1x512xf32>
    %cst_6 = arith.constant 9.99999974E-6 : f32
    %15 = vector.broadcast %cst_6 : f32 to vector<1x512xf32>
    %16 = arith.addf %14, %15 : vector<1x512xf32>
    %17 = math.rsqrt %16 : vector<1x512xf32>
    %18 = vector.broadcast %8 : vector<1x512xf32> to vector<32x512xf32>
    %19 = arith.subf %1, %18 : vector<32x512xf32>
    %20 = vector.broadcast %17 : vector<1x512xf32> to vector<32x512xf32>
    %21 = arith.mulf %19, %20 : vector<32x512xf32>
    %c0_7 = arith.constant 0 : index
    %c0_8 = arith.constant 0 : index
    %22 = vector.load %arg3[%c0_7, %c0_8] : memref<32x1xf32, #tpu.memory_space<vmem>>, vector<32x1xf32>
    %23 = vector.broadcast %22 : vector<32x1xf32> to vector<32x512xf32>
    %24 = arith.mulf %21, %23 : vector<32x512xf32>
    %c0_9 = arith.constant 0 : index
    %c0_10 = arith.constant 0 : index
    %25 = vector.load %arg4[%c0_9, %c0_10] : memref<32x1xf32, #tpu.memory_space<vmem>>, vector<32x1xf32>
    %26 = vector.broadcast %25 : vector<32x1xf32> to vector<32x512xf32>
    %27 = arith.addf %24, %26 : vector<32x512xf32>
    %28 = tpu.transpose %27, [1, 0] : vector<32x512xf32> -> vector<512x32xf32>
    %c0_11 = arith.constant 0 : index
    %c0_12 = arith.constant 0 : index
    %c0_13 = arith.constant 0 : index
    %29 = vector.load %arg5[%c0_11, %c0_12, %c0_13] : memref<1x512x32xf32, #tpu.memory_space<vmem>>, vector<1x512x32xf32>
    %30 = vector.shape_cast %29 : vector<1x512x32xf32> to vector<512x32xf32>
    %31 = vector.shape_cast %28 : vector<512x32xf32> to vector<1x512x32xf32>
    tpu.vector_store %arg5[%c0_11, %c0_12, %c0_13], %31 {strides = array<i32>} : memref<1x512x32xf32, #tpu.memory_space<vmem>>, vector<1x512x32xf32>,
    return
  }
  func.func @transform_0(%arg0: i32, %arg1: i32) -> (i32, i32, i32) {
    %c0_i32 = arith.constant 0 : i32
    %c0_i32_0 = arith.constant 0 : i32
    return %arg0, %c0_i32, %arg1 : i32, i32, i32
  }
  func.func @transform_1(%arg0: i32, %arg1: i32) -> (i32, i32) {
    %c0_i32 = arith.constant 0 : i32
    %c0_i32_0 = arith.constant 0 : i32
    %c0_i32_1 = arith.constant 0 : i32
    return %c0_i32, %c0_i32_0 : i32, i32
  }
  func.func @transform_2(%arg0: i32, %arg1: i32) -> (i32, i32) {
    %c0_i32 = arith.constant 0 : i32
    %c0_i32_0 = arith.constant 0 : i32
    %c0_i32_1 = arith.constant 0 : i32
    return %c0_i32, %c0_i32_0 : i32, i32
  }
  func.func @transform_3(%arg0: i32, %arg1: i32) -> (i32, i32, i32) {
    %c0_i32 = arith.constant 0 : i32
    %c0_i32_0 = arith.constant 0 : i32
    return %arg0, %arg1, %c0_i32 : i32, i32, i32
  }
}

</mosaic_0001>

<llo_original>
// kernel: tpu_custom_call.1
$region0: #{tpu_custom_call.1}
  #allocation0 [shape = 'u32[]', space=smem, size = 0x4, offset = 0x4, fixed_abs, tag = 'smem constant byte address 0x4 - core index']
  #allocation1 [shape = 'u32[144,128]{1,0:T(1,128)}', space=vmem, size = 0x12000, scoped, tag = 'internal scratch']
  %s0 = inlined_call_operand.hbm [shape: f32[2,32,512], index: 0, kind: input, shape index: {}]
  %s1 = inlined_call_operand.vmem [shape: f32[32,1], index: 1, kind: input, shape index: {}]
  %s2 = inlined_call_operand.vmem [shape: f32[32,1], index: 2, kind: input, shape index: {}]
  %s3 = inlined_call_operand.vmem [shape: f32[2,512,32], index: 3, kind: output, shape index: {}]
  %s4 = sld [smem:[#allocation0]]
  $region49: #{tpu_custom_call.1} parent=0
    _
  %s6 = ssub.s32 1, %s4
  %s7 = scalar_select 0, %s6, %s4
  $region1: #{tpu_custom_call.1} parent=0
    #allocation2 [shape = 'u8[131072]{0}', space=vmem, size = 0x20000, scoped, tag = 'input window, operand 0']
    #allocation3 [shape = 's32[2]{0}', space=sflag, size = 0x8, scoped, tag = 'scoped memory for tpu_custom_call.1']
    %8 = vsyncpa [#allocation3], 0
    %s9 = scalar_lea.sflag [#allocation3], 1
    %10 = vsyncpa %s9, 0
    loop: start=0, step=1, limit=4
    $region2: #{tpu_custom_call.1} parent=1 // loop_pre_header
      _
    $region3: #{tpu_custom_call.1} parent=1 // loop_header
      %s12 = sphi 0, %s16
      %p13 = scmp.ge.s32.totalorder %s12, 4
      %s19 = sphi 0, %s31
      %s20 = sphi 0, %s27
      %s21 = sphi 0, %s19
      %s22 = sphi 0, %s20
      %s23 = sphi 0, %s21
      %s24 = sphi 0, %s22
      %s36 = sphi 0, %s38
      %s39 = sphi 0, %s36
      %s40 = sphi 0, %s39
      %s56 = sphi 0, %s40
      %s60 = sphi 0, %s60
      %s62 = sphi 0, %s60
      %s63 = sphi 0, %s62
      %s77 = sphi 0, %s63
      %s81 = sphi 0, %s81
      %s83 = sphi 0, %s81
      %s84 = sphi 0, %s83
      %s98 = sphi 0, %s84
      %s106 = sphi 0, %s108
      %s109 = sphi 0, %s106
      %s110 = sphi 0, %s109
      %s126 = sphi 0, %s110
    $region4: #{tpu_custom_call.1} parent=1 // loop_header_branch
      %15 = sbr.rel (%p13) target = $region8
    $region5: #{tpu_custom_call.1} parent=1 // loop_body
      %s17 = ssub.s32 %s12, 1
      %s18 = ssub.s32 %s12, 2
      %s25 = sadd.s32 1, %s20
      %p26 = scmp.ge.s32.totalorder %s25, 1
      %s27 = scalar_select %p26, 0, %s25
      %s28 = sadd.s32 1, %s19
      %s29 = scalar_select %p26, %s28, %s19
      %p30 = scmp.ge.s32.totalorder %s29, 2
      %s31 = scalar_select %p30, 0, %s29
      %s32 = ssub.s32 %s19, %s31
      %s33 = ssub.s32 %s20, %s27
      %s34 = sor.u32 %s32, %s33
      %p35 = scmp.eq.s32.totalorder %s34, 0
      %s37 = sadd.s32 %s36, 1
      %s38 = scalar_select %p35, %s36, %s37
      %p41 = pneg %p35
      %p42 = scmp.eq.s32.totalorder %s12, 1
      %p43 = por %p41, %p42
      %p44 = scmp.ne.s32.totalorder %s36, %s39
      %p45 = scmp.eq.s32.totalorder %s12, 0
      %p46 = por %p44, %p45
      %p47 = scmp.ne.s32.totalorder %s36, %s39
      %p48 = scmp.eq.s32.totalorder %s17, 1
      %p49 = por %p47, %p48
      %p50 = scmp.ne.s32.totalorder %s39, %s40
      %p51 = scmp.eq.s32.totalorder %s17, 0
      %p52 = por %p50, %p51
      %p53 = scmp.ne.s32.totalorder %s39, %s40
      %p54 = scmp.eq.s32.totalorder %s18, 1
      %p55 = por %p53, %p54
      %p57 = scmp.ne.s32.totalorder %s40, %s56
      %p58 = scmp.eq.s32.totalorder %s18, 0
      %p59 = por %p57, %p58
      %s61 = sadd.s32 %s60, 1
      %p64 = scmp.eq.s32.totalorder %s12, 1
      %p65 = scmp.ne.s32.totalorder %s60, %s62
      %p66 = scmp.eq.s32.totalorder %s12, 0
      %p67 = por %p65, %p66
      %p68 = scmp.ne.s32.totalorder %s60, %s62
      %p69 = scmp.eq.s32.totalorder %s17, 1
      %p70 = por %p68, %p69
      %p71 = scmp.ne.s32.totalorder %s62, %s63
      %p72 = scmp.eq.s32.totalorder %s17, 0
      %p73 = por %p71, %p72
      %p74 = scmp.ne.s32.totalorder %s62, %s63
      %p75 = scmp.eq.s32.totalorder %s18, 1
      %p76 = por %p74, %p75
      %p78 = scmp.ne.s32.totalorder %s63, %s77
      %p79 = scmp.eq.s32.totalorder %s18, 0
      %p80 = por %p78, %p79
      %s82 = sadd.s32 %s81, 1
      %p85 = scmp.eq.s32.totalorder %s12, 1
      %p86 = scmp.ne.s32.totalorder %s81, %s83
      %p87 = scmp.eq.s32.totalorder %s12, 0
      %p88 = por %p86, %p87
      %p89 = scmp.ne.s32.totalorder %s81, %s83
      %p90 = scmp.eq.s32.totalorder %s17, 1
      %p91 = por %p89, %p90
      %p92 = scmp.ne.s32.totalorder %s83, %s84
      %p93 = scmp.eq.s32.totalorder %s17, 0
      %p94 = por %p92, %p93
      %p95 = scmp.ne.s32.totalorder %s83, %s84
      %p96 = scmp.eq.s32.totalorder %s18, 1
      %p97 = por %p95, %p96
      %p99 = scmp.ne.s32.totalorder %s84, %s98
      %p100 = scmp.eq.s32.totalorder %s18, 0
      %p101 = por %p99, %p100
      %s102 = ssub.s32 %s19, %s31
      %s103 = ssub.s32 %s20, %s27
      %s104 = sor.u32 %s102, %s103
      %p105 = scmp.eq.s32.totalorder %s104, 0
      %s107 = sadd.s32 %s106, 1
      %s108 = scalar_select %p105, %s106, %s107
      %p111 = pneg %p105
      %p112 = scmp.eq.s32.totalorder %s12, 1
      %p113 = por %p111, %p112
      %p114 = scmp.ne.s32.totalorder %s106, %s109
      %p115 = scmp.eq.s32.totalorder %s12, 0
      %p116 = por %p114, %p115
      %p117 = scmp.ne.s32.totalorder %s106, %s109
      %p118 = scmp.eq.s32.totalorder %s17, 1
      %p119 = por %p117, %p118
      %p120 = scmp.ne.s32.totalorder %s109, %s110
      %p121 = scmp.eq.s32.totalorder %s17, 0
      %p122 = por %p120, %p121
      %p123 = scmp.ne.s32.totalorder %s109, %s110
      %p124 = scmp.eq.s32.totalorder %s18, 1
      %p125 = por %p123, %p124
      %p127 = scmp.ne.s32.totalorder %s110, %s126
      %p128 = scmp.eq.s32.totalorder %s18, 0
      %p129 = por %p127, %p128
      %p130 = scmp.le.s32.totalorder 1, %s12
      %p131 = scmp.lt.s32.totalorder %s12, 3
      %p132 = pnand %p130, %p131
      %p133 = pneg %p132
      // Predicated region
      $region9: #{tpu_custom_call.1} parent=5 // pred_check
        _
      $region10: #{tpu_custom_call.1} parent=5 // pred_check_branch
        %135 = sbr.rel (%p132) target = $region12
      $region11: #{tpu_custom_call.1} parent=5 // pred_region
        %s136 = ssub.s32 %s12, 1
        // Predicated region
        $region13: #{tpu_custom_call.1} parent=11 // pred_check
          %p137 = pneg %p73
        $region14: #{tpu_custom_call.1} parent=11 // pred_check_branch
          %139 = sbr.rel (%p137) target = $region16
        $region15: #{tpu_custom_call.1} parent=11 // pred_region
          _
        $region16: #{tpu_custom_call.1} parent=11 // pred_fallthru
          _
        // Predicated region
        $region17: #{tpu_custom_call.1} parent=11 // pred_check
          %p140 = pneg %p94
        $region18: #{tpu_custom_call.1} parent=11 // pred_check_branch
          %142 = sbr.rel (%p140) target = $region20
        $region19: #{tpu_custom_call.1} parent=11 // pred_region
          _
        $region20: #{tpu_custom_call.1} parent=11 // pred_fallthru
          _
      $region12: #{tpu_custom_call.1} parent=5 // pred_fallthru
        _
      %p143 = scmp.lt.s32.totalorder %s12, 2
      // Predicated region
      $region21: #{tpu_custom_call.1} parent=5 // pred_check
        %p144 = pneg %p143
      $region22: #{tpu_custom_call.1} parent=5 // pred_check_branch
        %146 = sbr.rel (%p144) target = $region24
      $region23: #{tpu_custom_call.1} parent=5 // pred_region
        // Predicated region
        $region25: #{tpu_custom_call.1} parent=23 // pred_check
          %p147 = pneg %p46
        $region26: #{tpu_custom_call.1} parent=23 // pred_check_branch
          %149 = sbr.rel (%p147) target = $region28
        $region27: #{tpu_custom_call.1} parent=23 // pred_region
          %s150 = sand.u32 %s36, 1
          %s151 = scalar_lea.sflag [#allocation3], %s150
          %s152 = sand.u32 %s36, 1
          %s153 = smul.addr %s152, 128
          %s154 = scalar_lea.vmem [#allocation2], %s153
          %s155 = smul.u32 4, %s20
          %s157 = ssub.s32 2048, 2048
          %158 = vsyncadd %s151, %s157
          %s159 = smul.addr %s19, 16
          %s160 = sadd.s32 %s155, %s159
          %s161 = smul.addr %s160, 128
          %s162 = scalar_lea.hbm %s0, %s161
          %s163 = sshll.u32 %s154, 4
          %s164 = int_to_ptr.vmem [resolvable:$true] %s163
          %169 = dma.hbm_to_vmem [thread:$0]  %s162, 2048, %s164, %s151, 512, 512, 32
        $region28: #{tpu_custom_call.1} parent=23 // pred_fallthru
          _
      $region24: #{tpu_custom_call.1} parent=5 // pred_fallthru
        _
      %p170 = scmp.le.s32.totalorder 1, %s12
      %p171 = scmp.lt.s32.totalorder %s12, 3
      %p172 = pnand %p170, %p171
      %p173 = pneg %p172
      // Predicated region
      $region29: #{tpu_custom_call.1} parent=5 // pred_check
        _
      $region30: #{tpu_custom_call.1} parent=5 // pred_check_branch
        %175 = sbr.rel (%p172) target = $region32
      $region31: #{tpu_custom_call.1} parent=5 // pred_region
        %s176 = ssub.s32 %s12, 1
        %s177 = sand.u32 %s39, 1
        %s178 = scalar_lea.sflag [#allocation3], %s177
        %s179 = sand.u32 %s39, 1
        %s180 = smul.addr %s179, 128
        %s181 = scalar_lea.vmem [#allocation2], %s180
        // Predicated region
        $region33: #{tpu_custom_call.1} parent=31 // pred_check
          %p182 = pneg %p52
        $region34: #{tpu_custom_call.1} parent=31 // pred_check_branch
          %184 = sbr.rel (%p182) target = $region36
        $region35: #{tpu_custom_call.1} parent=31 // pred_region
          %185 = dma.done %s178, 2048
        $region36: #{tpu_custom_call.1} parent=31 // pred_fallthru
          _
        %s186 = sand.u32 %s39, 1
        %s187 = scalar_lea.sflag [#allocation3], %s186
        %s188 = sand.u32 %s39, 1
        %s189 = smul.addr %s188, 128
        %s190 = scalar_lea.vmem [#allocation2], %s189
        %p191 = pneg %p52
        %p192 = pneg %p49
        %p193 = pneg %p73
        %p194 = pneg %p70
        %p195 = pneg %p94
        %p196 = pneg %p91
        %p197 = pneg %p122
        %p198 = pneg %p119
        %s199 = smul.u32 64, %s22
        %p200 = scmp.lt.s32.totalorder %s21, 1
        %s201 = scalar_select %p200, %s21, 1
        %p202 = scmp.lt.s32.totalorder %s199, 63
        %s203 = scalar_select %p202, %s199, 63
        %s204 = smul.addr %s201, 64
        %s205 = sadd.s32 %s203, %s204
        %s206 = smul.addr %s205, 8
        %s207 = scalar_lea.vmem %s3, %s206
        %s208 = smul.u32 4, %s22
        %s209 = smul.u32 64, %s22
        %p210 = scmp.lt.s32.totalorder %s21, 1
        %s211 = scalar_select %p210, %s21, 1
        %p212 = scmp.lt.s32.totalorder %s209, 63
        %s213 = scalar_select %p212, %s209, 63
        %s214 = smul.addr %s211, 64
        %s215 = sadd.s32 %s213, %s214
        %s216 = smul.addr %s215, 8
        %s217 = scalar_lea.vmem %s3, %s216
        %s218 = smul.u32 64, %s22
        %v219 = vld [vmem:[%s181] sm:$0xff]
        %v220 = vld [vmem:[%s181 + $0x8] sm:$0xff]
        %v221 = vld [vmem:[%s181 + $0x10] sm:$0xff]
        %v222 = vld [vmem:[%s181 + $0x18] sm:$0xff]
        %v223 = vld [vmem:[%s181 + $0x20] sm:$0xff]
        %v224 = vld [vmem:[%s181 + $0x28] sm:$0xff]
        %v225 = vld [vmem:[%s181 + $0x30] sm:$0xff]
        %v226 = vld [vmem:[%s181 + $0x38] sm:$0xff]
        %v227 = vld [vmem:[%s181 + $0x40] sm:$0xff]
        %v228 = vld [vmem:[%s181 + $0x48] sm:$0xff]
        %v229 = vld [vmem:[%s181 + $0x50] sm:$0xff]
        %v230 = vld [vmem:[%s181 + $0x58] sm:$0xff]
        %v231 = vld [vmem:[%s181 + $0x60] sm:$0xff]
        %v232 = vld [vmem:[%s181 + $0x68] sm:$0xff]
        %v233 = vld [vmem:[%s181 + $0x70] sm:$0xff]
        %v234 = vld [vmem:[%s181 + $0x78] sm:$0xff]
        %v235 = vadd.f32 %v219, %v223
        %v236 = vadd.f32 %v235, %v227
        %v237 = vadd.f32 %v236, %v231
        %v238 = vrot.slane %v237, 4
        %v239 = vadd.f32 %v237, %v238
        %v240 = vrot.slane %v239, 2
        %v241 = vadd.f32 %v239, %v240
        %v242 = vrot.slane %v241, 1
        %v243 = vadd.f32 %v241, %v242
        %v244 = vadd.f32 %v220, %v224
        %v245 = vadd.f32 %v244, %v228
        %v246 = vadd.f32 %v245, %v232
        %v247 = vrot.slane %v246, 4
        %v248 = vadd.f32 %v246, %v247
        %v249 = vrot.slane %v248, 2
        %v250 = vadd.f32 %v248, %v249
        %v251 = vrot.slane %v250, 1
        %v252 = vadd.f32 %v250, %v251
        %v253 = vadd.f32 %v221, %v225
        %v254 = vadd.f32 %v253, %v229
        %v255 = vadd.f32 %v254, %v233
        %v256 = vrot.slane %v255, 4
        %v257 = vadd.f32 %v255, %v256
        %v258 = vrot.slane %v257, 2
        %v259 = vadd.f32 %v257, %v258
        %v260 = vrot.slane %v259, 1
        %v261 = vadd.f32 %v259, %v260
        %v262 = vadd.f32 %v222, %v226
        %v263 = vadd.f32 %v262, %v230
        %v264 = vadd.f32 %v263, %v234
        %v265 = vrot.slane %v264, 4
        %v266 = vadd.f32 %v264, %v265
        %v267 = vrot.slane %v266, 2
        %v268 = vadd.f32 %v266, %v267
        %v269 = vrot.slane %v268, 1
        %v270 = vadd.f32 %v268, %v269
        %v271 = vmul.f32 %v219, %v219
        %v272 = vmul.f32 %v220, %v220
        %v273 = vmul.f32 %v221, %v221
        %v274 = vmul.f32 %v222, %v222
        %v275 = vmul.f32 %v223, %v223
        %v276 = vmul.f32 %v224, %v224
        %v277 = vmul.f32 %v225, %v225
        %v278 = vmul.f32 %v226, %v226
        %v279 = vmul.f32 %v227, %v227
        %v280 = vmul.f32 %v228, %v228
        %v281 = vmul.f32 %v229, %v229
        %v282 = vmul.f32 %v230, %v230
        %v283 = vmul.f32 %v231, %v231
        %v284 = vmul.f32 %v232, %v232
        %v285 = vmul.f32 %v233, %v233
        %v286 = vmul.f32 %v234, %v234
        %v287 = vadd.f32 %v271, %v275
        %v288 = vadd.f32 %v287, %v279
        %v289 = vadd.f32 %v288, %v283
        %v290 = vrot.slane %v289, 4
        %v291 = vadd.f32 %v289, %v290
        %v292 = vrot.slane %v291, 2
        %v293 = vadd.f32 %v291, %v292
        %v294 = vrot.slane %v293, 1
        %v295 = vadd.f32 %v293, %v294
        %v296 = vadd.f32 %v272, %v276
        %v297 = vadd.f32 %v296, %v280
        %v298 = vadd.f32 %v297, %v284
        %v299 = vrot.slane %v298, 4
        %v300 = vadd.f32 %v298, %v299
        %v301 = vrot.slane %v300, 2
        %v302 = vadd.f32 %v300, %v301
        %v303 = vrot.slane %v302, 1
        %v304 = vadd.f32 %v302, %v303
        %v305 = vadd.f32 %v273, %v277
        %v306 = vadd.f32 %v305, %v281
        %v307 = vadd.f32 %v306, %v285
        %v308 = vrot.slane %v307, 4
        %v309 = vadd.f32 %v307, %v308
        %v310 = vrot.slane %v309, 2
        %v311 = vadd.f32 %v309, %v310
        %v312 = vrot.slane %v311, 1
        %v313 = vadd.f32 %v311, %v312
        %v314 = vadd.f32 %v274, %v278
        %v315 = vadd.f32 %v314, %v282
        %v316 = vadd.f32 %v315, %v286
        %v317 = vrot.slane %v316, 4
        %v318 = vadd.f32 %v316, %v317
        %v319 = vrot.slane %v318, 2
        %v320 = vadd.f32 %v318, %v319
        %v321 = vrot.slane %v320, 1
        %v322 = vadd.f32 %v320, %v321
        %v323 = vmul.f32 %v243, 0.03125
        %v324 = vmul.f32 %v252, 0.03125
        %v325 = vmul.f32 %v261, 0.03125
        %v326 = vmul.f32 %v270, 0.03125
        %v327 = vmul.f32 %v295, 0.03125
        %v328 = vmul.f32 %v304, 0.03125
        %v329 = vmul.f32 %v313, 0.03125
        %v330 = vmul.f32 %v322, 0.03125
        %v331 = vmul.f32 %v323, %v323
        %v332 = vmul.f32 %v324, %v324
        %v333 = vmul.f32 %v325, %v325
        %v334 = vmul.f32 %v326, %v326
        %v335 = vsub.f32 %v327, %v331
        %v336 = vsub.f32 %v328, %v332
        %v337 = vsub.f32 %v329, %v333
        %v338 = vsub.f32 %v330, %v334
        %v339 = vmax.f32 %v335, 0.0
        %v340 = vmax.f32 %v336, 0.0
        %v341 = vmax.f32 %v337, 0.0
        %v342 = vmax.f32 %v338, 0.0
        %v343 = vadd.f32 %v339, 1e-05
        %v344 = vadd.f32 %v340, 1e-05
        %v345 = vadd.f32 %v341, 1e-05
        %v346 = vadd.f32 %v342, 1e-05
        %v347 = vrsqrt.pop %v343
        %v348 = vrsqrt.pop %v344
        %v349 = vrsqrt.pop %v345
        %v350 = vrsqrt.pop %v346
        %v351 = vsub.f32 %v219, %v323
        %v352 = vsub.f32 %v220, %v324
        %v353 = vsub.f32 %v221, %v325
        %v354 = vsub.f32 %v222, %v326
        %v355 = vsub.f32 %v223, %v323
        %v356 = vsub.f32 %v224, %v324
        %v357 = vsub.f32 %v225, %v325
        %v358 = vsub.f32 %v226, %v326
        %v359 = vsub.f32 %v227, %v323
        %v360 = vsub.f32 %v228, %v324
        %v361 = vsub.f32 %v229, %v325
        %v362 = vsub.f32 %v230, %v326
        %v363 = vsub.f32 %v231, %v323
        %v364 = vsub.f32 %v232, %v324
        %v365 = vsub.f32 %v233, %v325
        %v366 = vsub.f32 %v234, %v326
        %v367 = vmul.f32 %v351, %v347
        %v368 = vmul.f32 %v352, %v348
        %v369 = vmul.f32 %v353, %v349
        %v370 = vmul.f32 %v354, %v350
        %v371 = vmul.f32 %v355, %v347
        %v372 = vmul.f32 %v356, %v348
        %v373 = vmul.f32 %v357, %v349
        %v374 = vmul.f32 %v358, %v350
        %v375 = vmul.f32 %v359, %v347
        %v376 = vmul.f32 %v360, %v348
        %v377 = vmul.f32 %v361, %v349
        %v378 = vmul.f32 %v362, %v350
        %v379 = vmul.f32 %v363, %v347
        %v380 = vmul.f32 %v364, %v348
        %v381 = vmul.f32 %v365, %v349
        %v382 = vmul.f32 %v366, %v350
        %v383 = vld [vmem:[%s1] sm:$0xff]
        %v384 = vld [vmem:[%s1 + $0x8] sm:$0xff]
        %v385 = vld [vmem:[%s1 + $0x10] sm:$0xff]
        %v386 = vld [vmem:[%s1 + $0x18] sm:$0xff]
        %388 = vset.pattern.permute.xlu0 0
        %389 = vperm.xlu0 %388, %v383
        %v390 = vpop.permute.xlu0 %389
        %393 = vset.pattern.permute.xlu0 0
        %394 = vperm.xlu0 %393, %v384
        %v395 = vpop.permute.xlu0 %394
        %398 = vset.pattern.permute.xlu0 0
        %399 = vperm.xlu0 %398, %v385
        %v400 = vpop.permute.xlu0 %399
        %403 = vset.pattern.permute.xlu0 0
        %404 = vperm.xlu0 %403, %v386
        %v405 = vpop.permute.xlu0 %404
        %v407 = vmul.f32 %v367, %v390
        %v408 = vmul.f32 %v368, %v390
        %v409 = vmul.f32 %v369, %v390
        %v410 = vmul.f32 %v370, %v390
        %v411 = vmul.f32 %v371, %v395
        %v412 = vmul.f32 %v372, %v395
        %v413 = vmul.f32 %v373, %v395
        %v414 = vmul.f32 %v374, %v395
        %v415 = vmul.f32 %v375, %v400
        %v416 = vmul.f32 %v376, %v400
        %v417 = vmul.f32 %v377, %v400
        %v418 = vmul.f32 %v378, %v400
        %v419 = vmul.f32 %v379, %v405
        %v420 = vmul.f32 %v380, %v405
        %v421 = vmul.f32 %v381, %v405
        %v422 = vmul.f32 %v382, %v405
        %v423 = vld [vmem:[%s2] sm:$0xff]
        %v424 = vld [vmem:[%s2 + $0x8] sm:$0xff]
        %v425 = vld [vmem:[%s2 + $0x10] sm:$0xff]
        %v426 = vld [vmem:[%s2 + $0x18] sm:$0xff]
        %428 = vset.pattern.permute.xlu0 0
        %429 = vperm.xlu0 %428, %v423
        %v430 = vpop.permute.xlu0 %429
        %433 = vset.pattern.permute.xlu0 0
        %434 = vperm.xlu0 %433, %v424
        %v435 = vpop.permute.xlu0 %434
        %438 = vset.pattern.permute.xlu0 0
        %439 = vperm.xlu0 %438, %v425
        %v440 = vpop.permute.xlu0 %439
        %443 = vset.pattern.permute.xlu0 0
        %444 = vperm.xlu0 %443, %v426
        %v445 = vpop.permute.xlu0 %444
        %v447 = vadd.f32 %v407, %v430
        %v448 = vadd.f32 %v408, %v430
        %v449 = vadd.f32 %v409, %v430
        %v450 = vadd.f32 %v410, %v430
        %v451 = vadd.f32 %v411, %v435
        %v452 = vadd.f32 %v412, %v435
        %v453 = vadd.f32 %v413, %v435
        %v454 = vadd.f32 %v414, %v435
        %v455 = vadd.f32 %v415, %v440
        %v456 = vadd.f32 %v416, %v440
        %v457 = vadd.f32 %v417, %v440
        %v458 = vadd.f32 %v418, %v440
        %v459 = vadd.f32 %v419, %v445
        %v460 = vadd.f32 %v420, %v445
        %v461 = vadd.f32 %v421, %v445
        %v462 = vadd.f32 %v422, %v445
        %463 = vxpose.xlu0.b32.start [1/16] %v447, 128
        %464 = vxpose.xlu0.b32.cont [2/16] %v451, 128
        %465 = vxpose.xlu0.b32.cont [3/16] %v455, 128
        %466 = vxpose.xlu0.b32.cont [4/16] %v459, 128
        %467 = vxpose.xlu0.b32.cont [5/16] 0.0, 128
        %468 = vxpose.xlu0.b32.cont [6/16] 0.0, 128
        %469 = vxpose.xlu0.b32.cont [7/16] 0.0, 128
        %470 = vxpose.xlu0.b32.cont [8/16] 0.0, 128
        %471 = vxpose.xlu0.b32.cont [9/16] 0.0, 128
        %472 = vxpose.xlu0.b32.cont [10/16] 0.0, 128
        %473 = vxpose.xlu0.b32.cont [11/16] 0.0, 128
        %474 = vxpose.xlu0.b32.cont [12/16] 0.0, 128
        %475 = vxpose.xlu0.b32.cont [13/16] 0.0, 128
        %476 = vxpose.xlu0.b32.cont [14/16] 0.0, 128
        %477 = vxpose.xlu0.b32.cont [15/16] 0.0, 128
        %478 = vxpose.xlu0.b32.end [16/16] 0.0, 128
        %v479 = vpop.trf.xlu0
        %v480 = vpop.trf.xlu0
        %v481 = vpop.trf.xlu0
        %v482 = vpop.trf.xlu0
        %v483 = vpop.trf.xlu0
        %v484 = vpop.trf.xlu0
        %v485 = vpop.trf.xlu0
        %v486 = vpop.trf.xlu0
        %v487 = vpop.trf.xlu0
        %v488 = vpop.trf.xlu0
        %v489 = vpop.trf.xlu0
        %v490 = vpop.trf.xlu0
        %v491 = vpop.trf.xlu0
        %v492 = vpop.trf.xlu0
        %v493 = vpop.trf.xlu0
        %v494 = vpop.trf.xlu0
        %495 = vxpose.xlu0.b32.start [1/16] %v448, 128
        %496 = vxpose.xlu0.b32.cont [2/16] %v452, 128
        %497 = vxpose.xlu0.b32.cont [3/16] %v456, 128
        %498 = vxpose.xlu0.b32.cont [4/16] %v460, 128
        %499 = vxpose.xlu0.b32.cont [5/16] 0.0, 128
        %500 = vxpose.xlu0.b32.cont [6/16] 0.0, 128
        %501 = vxpose.xlu0.b32.cont [7/16] 0.0, 128
        %502 = vxpose.xlu0.b32.cont [8/16] 0.0, 128
        %503 = vxpose.xlu0.b32.cont [9/16] 0.0, 128
        %504 = vxpose.xlu0.b32.cont [10/16] 0.0, 128
        %505 = vxpose.xlu0.b32.cont [11/16] 0.0, 128
        %506 = vxpose.xlu0.b32.cont [12/16] 0.0, 128
        %507 = vxpose.xlu0.b32.cont [13/16] 0.0, 128
        %508 = vxpose.xlu0.b32.cont [14/16] 0.0, 128
        %509 = vxpose.xlu0.b32.cont [15/16] 0.0, 128
        %510 = vxpose.xlu0.b32.end [16/16] 0.0, 128
        %v511 = vpop.trf.xlu0
        %v512 = vpop.trf.xlu0
        %v513 = vpop.trf.xlu0
        %v514 = vpop.trf.xlu0
        %v515 = vpop.trf.xlu0
        %v516 = vpop.trf.xlu0
        %v517 = vpop.trf.xlu0
        %v518 = vpop.trf.xlu0
        %v519 = vpop.trf.xlu0
        %v520 = vpop.trf.xlu0
        %v521 = vpop.trf.xlu0
        %v522 = vpop.trf.xlu0
        %v523 = vpop.trf.xlu0
        %v524 = vpop.trf.xlu0
        %v525 = vpop.trf.xlu0
        %v526 = vpop.trf.xlu0
        %527 = vxpose.xlu0.b32.start [1/16] %v449, 128
        %528 = vxpose.xlu0.b32.cont [2/16] %v453, 128
        %529 = vxpose.xlu0.b32.cont [3/16] %v457, 128
        %530 = vxpose.xlu0.b32.cont [4/16] %v461, 128
        %531 = vxpose.xlu0.b32.cont [5/16] 0.0, 128
        %532 = vxpose.xlu0.b32.cont [6/16] 0.0, 128
        %533 = vxpose.xlu0.b32.cont [7/16] 0.0, 128
        %534 = vxpose.xlu0.b32.cont [8/16] 0.0, 128
        %535 = vxpose.xlu0.b32.cont [9/16] 0.0, 128
        %536 = vxpose.xlu0.b32.cont [10/16] 0.0, 128
        %537 = vxpose.xlu0.b32.cont [11/16] 0.0, 128
        %538 = vxpose.xlu0.b32.cont [12/16] 0.0, 128
        %539 = vxpose.xlu0.b32.cont [13/16] 0.0, 128
        %540 = vxpose.xlu0.b32.cont [14/16] 0.0, 128
        %541 = vxpose.xlu0.b32.cont [15/16] 0.0, 128
        %542 = vxpose.xlu0.b32.end [16/16] 0.0, 128
        %v543 = vpop.trf.xlu0
        %v544 = vpop.trf.xlu0
        %v545 = vpop.trf.xlu0
        %v546 = vpop.trf.xlu0
        %v547 = vpop.trf.xlu0
        %v548 = vpop.trf.xlu0
        %v549 = vpop.trf.xlu0
        %v550 = vpop.trf.xlu0
        %v551 = vpop.trf.xlu0
        %v552 = vpop.trf.xlu0
        %v553 = vpop.trf.xlu0
        %v554 = vpop.trf.xlu0
        %v555 = vpop.trf.xlu0
        %v556 = vpop.trf.xlu0
        %v557 = vpop.trf.xlu0
        %v558 = vpop.trf.xlu0
        %559 = vxpose.xlu0.b32.start [1/16] %v450, 128
        %560 = vxpose.xlu0.b32.cont [2/16] %v454, 128
        %561 = vxpose.xlu0.b32.cont [3/16] %v458, 128
        %562 = vxpose.xlu0.b32.cont [4/16] %v462, 128
        %563 = vxpose.xlu0.b32.cont [5/16] 0.0, 128
        %564 = vxpose.xlu0.b32.cont [6/16] 0.0, 128
        %565 = vxpose.xlu0.b32.cont [7/16] 0.0, 128
        %566 = vxpose.xlu0.b32.cont [8/16] 0.0, 128
        %567 = vxpose.xlu0.b32.cont [9/16] 0.0, 128
        %568 = vxpose.xlu0.b32.cont [10/16] 0.0, 128
        %569 = vxpose.xlu0.b32.cont [11/16] 0.0, 128
        %570 = vxpose.xlu0.b32.cont [12/16] 0.0, 128
        %571 = vxpose.xlu0.b32.cont [13/16] 0.0, 128
        %572 = vxpose.xlu0.b32.cont [14/16] 0.0, 128
        %573 = vxpose.xlu0.b32.cont [15/16] 0.0, 128
        %574 = vxpose.xlu0.b32.end [16/16] 0.0, 128
        %v575 = vpop.trf.xlu0
        %v576 = vpop.trf.xlu0
        %v577 = vpop.trf.xlu0
        %v578 = vpop.trf.xlu0
        %v579 = vpop.trf.xlu0
        %v580 = vpop.trf.xlu0
        %v581 = vpop.trf.xlu0
        %v582 = vpop.trf.xlu0
        %v583 = vpop.trf.xlu0
        %v584 = vpop.trf.xlu0
        %v585 = vpop.trf.xlu0
        %v586 = vpop.trf.xlu0
        %v587 = vpop.trf.xlu0
        %v588 = vpop.trf.xlu0
        %v589 = vpop.trf.xlu0
        %v590 = vpop.trf.xlu0
        %vm591 = vcmask 261120
        %592 = vst.msk [vmem:[%s217] sm:$0xff] %vm591, %v479
        %593 = vst.msk [vmem:[%s217 + $0x8] sm:$0xff] %vm591, %v480
        %594 = vst.msk [vmem:[%s217 + $0x10] sm:$0xff] %vm591, %v481
        %595 = vst.msk [vmem:[%s217 + $0x18] sm:$0xff] %vm591, %v482
        %596 = vst.msk [vmem:[%s217 + $0x20] sm:$0xff] %vm591, %v483
        %597 = vst.msk [vmem:[%s217 + $0x28] sm:$0xff] %vm591, %v484
        %598 = vst.msk [vmem:[%s217 + $0x30] sm:$0xff] %vm591, %v485
        %599 = vst.msk [vmem:[%s217 + $0x38] sm:$0xff] %vm591, %v486
        %600 = vst.msk [vmem:[%s217 + $0x40] sm:$0xff] %vm591, %v487
        %601 = vst.msk [vmem:[%s217 + $0x48] sm:$0xff] %vm591, %v488
        %602 = vst.msk [vmem:[%s217 + $0x50] sm:$0xff] %vm591, %v489
        %603 = vst.msk [vmem:[%s217 + $0x58] sm:$0xff] %vm591, %v490
        %604 = vst.msk [vmem:[%s217 + $0x60] sm:$0xff] %vm591, %v491
        %605 = vst.msk [vmem:[%s217 + $0x68] sm:$0xff] %vm591, %v492
        %606 = vst.msk [vmem:[%s217 + $0x70] sm:$0xff] %vm591, %v493
        %607 = vst.msk [vmem:[%s217 + $0x78] sm:$0xff] %vm591, %v494
        %608 = vst.msk [vmem:[%s217 + $0x80] sm:$0xff] %vm591, %v511
        %609 = vst.msk [vmem:[%s217 + $0x88] sm:$0xff] %vm591, %v512
        %610 = vst.msk [vmem:[%s217 + $0x90] sm:$0xff] %vm591, %v513
        %611 = vst.msk [vmem:[%s217 + $0x98] sm:$0xff] %vm591, %v514
        %612 = vst.msk [vmem:[%s217 + $0xa0] sm:$0xff] %vm591, %v515
        %613 = vst.msk [vmem:[%s217 + $0xa8] sm:$0xff] %vm591, %v516
        %614 = vst.msk [vmem:[%s217 + $0xb0] sm:$0xff] %vm591, %v517
        %615 = vst.msk [vmem:[%s217 + $0xb8] sm:$0xff] %vm591, %v518
        %616 = vst.msk [vmem:[%s217 + $0xc0] sm:$0xff] %vm591, %v519
        %617 = vst.msk [vmem:[%s217 + $0xc8] sm:$0xff] %vm591, %v520
        %618 = vst.msk [vmem:[%s217 + $0xd0] sm:$0xff] %vm591, %v521
        %619 = vst.msk [vmem:[%s217 + $0xd8] sm:$0xff] %vm591, %v522
        %620 = vst.msk [vmem:[%s217 + $0xe0] sm:$0xff] %vm591, %v523
        %621 = vst.msk [vmem:[%s217 + $0xe8] sm:$0xff] %vm591, %v524
        %622 = vst.msk [vmem:[%s217 + $0xf0] sm:$0xff] %vm591, %v525
        %623 = vst.msk [vmem:[%s217 + $0xf8] sm:$0xff] %vm591, %v526
        %624 = vst.msk [vmem:[%s217 + $0x100] sm:$0xff] %vm591, %v543
        %625 = vst.msk [vmem:[%s217 + $0x108] sm:$0xff] %vm591, %v544
        %626 = vst.msk [vmem:[%s217 + $0x110] sm:$0xff] %vm591, %v545
        %627 = vst.msk [vmem:[%s217 + $0x118] sm:$0xff] %vm591, %v546
        %628 = vst.msk [vmem:[%s217 + $0x120] sm:$0xff] %vm591, %v547
        %629 = vst.msk [vmem:[%s217 + $0x128] sm:$0xff] %vm591, %v548
        %630 = vst.msk [vmem:[%s217 + $0x130] sm:$0xff] %vm591, %v549
        %631 = vst.msk [vmem:[%s217 + $0x138] sm:$0xff] %vm591, %v550
        %632 = vst.msk [vmem:[%s217 + $0x140] sm:$0xff] %vm591, %v551
        %633 = vst.msk [vmem:[%s217 + $0x148] sm:$0xff] %vm591, %v552
        %634 = vst.msk [vmem:[%s217 + $0x150] sm:$0xff] %vm591, %v553
        %635 = vst.msk [vmem:[%s217 + $0x158] sm:$0xff] %vm591, %v554
        %636 = vst.msk [vmem:[%s217 + $0x160] sm:$0xff] %vm591, %v555
        %637 = vst.msk [vmem:[%s217 + $0x168] sm:$0xff] %vm591, %v556
        %638 = vst.msk [vmem:[%s217 + $0x170] sm:$0xff] %vm591, %v557
        %639 = vst.msk [vmem:[%s217 + $0x178] sm:$0xff] %vm591, %v558
        %640 = vst.msk [vmem:[%s217 + $0x180] sm:$0xff] %vm591, %v575
        %641 = vst.msk [vmem:[%s217 + $0x188] sm:$0xff] %vm591, %v576
        %642 = vst.msk [vmem:[%s217 + $0x190] sm:$0xff] %vm591, %v577
        %643 = vst.msk [vmem:[%s217 + $0x198] sm:$0xff] %vm591, %v578
        %644 = vst.msk [vmem:[%s217 + $0x1a0] sm:$0xff] %vm591, %v579
        %645 = vst.msk [vmem:[%s217 + $0x1a8] sm:$0xff] %vm591, %v580
        %646 = vst.msk [vmem:[%s217 + $0x1b0] sm:$0xff] %vm591, %v581
        %647 = vst.msk [vmem:[%s217 + $0x1b8] sm:$0xff] %vm591, %v582
        %648 = vst.msk [vmem:[%s217 + $0x1c0] sm:$0xff] %vm591, %v583
        %649 = vst.msk [vmem:[%s217 + $0x1c8] sm:$0xff] %vm591, %v584
        %650 = vst.msk [vmem:[%s217 + $0x1d0] sm:$0xff] %vm591, %v585
        %651 = vst.msk [vmem:[%s217 + $0x1d8] sm:$0xff] %vm591, %v586
        %652 = vst.msk [vmem:[%s217 + $0x1e0] sm:$0xff] %vm591, %v587
        %653 = vst.msk [vmem:[%s217 + $0x1e8] sm:$0xff] %vm591, %v588
        %654 = vst.msk [vmem:[%s217 + $0x1f0] sm:$0xff] %vm591, %v589
        %655 = vst.msk [vmem:[%s217 + $0x1f8] sm:$0xff] %vm591, %v590
        %s656 = smul.u32 64, %s22
        %p657 = scmp.lt.s32.totalorder %s21, 1
        %s658 = scalar_select %p657, %s21, 1
        %p659 = scmp.lt.s32.totalorder %s656, 63
        %s660 = scalar_select %p659, %s656, 63
        %s661 = smul.addr %s658, 64
        %s662 = sadd.s32 %s660, %s661
        %s663 = smul.addr %s662, 8
        %s664 = scalar_lea.vmem %s3, %s663
        // Predicated region
        $region37: #{tpu_custom_call.1} parent=31 // pred_check
          %p665 = pneg %p119
        $region38: #{tpu_custom_call.1} parent=31 // pred_check_branch
          %667 = sbr.rel (%p665) target = $region40
        $region39: #{tpu_custom_call.1} parent=31 // pred_region
          %s668 = smul.u32 64, %s22
        $region40: #{tpu_custom_call.1} parent=31 // pred_fallthru
          _
      $region32: #{tpu_custom_call.1} parent=5 // pred_fallthru
        _
      %p669 = scmp.le.s32.totalorder 2, %s12
      // Predicated region
      $region41: #{tpu_custom_call.1} parent=5 // pred_check
        %p670 = pneg %p669
      $region42: #{tpu_custom_call.1} parent=5 // pred_check_branch
        %672 = sbr.rel (%p670) target = $region44
      $region43: #{tpu_custom_call.1} parent=5 // pred_region
        %s673 = ssub.s32 %s12, 2
        // Predicated region
        $region45: #{tpu_custom_call.1} parent=43 // pred_check
          %p674 = pneg %p125
        $region46: #{tpu_custom_call.1} parent=43 // pred_check_branch
          %676 = sbr.rel (%p674) target = $region48
        $region47: #{tpu_custom_call.1} parent=43 // pred_region
          %s677 = smul.u32 64, %s24
          %p678 = scmp.lt.s32.totalorder %s23, 1
          %s679 = scalar_select %p678, %s23, 1
          %p680 = scmp.lt.s32.totalorder %s677, 63
          %s681 = scalar_select %p680, %s677, 63
          %s682 = smul.addr %s679, 64
          %s683 = sadd.s32 %s681, %s682
          %s684 = smul.addr %s683, 8
          %s685 = scalar_lea.vmem %s3, %s684
        $region48: #{tpu_custom_call.1} parent=43 // pred_fallthru
          _
      $region44: #{tpu_custom_call.1} parent=5 // pred_fallthru
        _
    $region6: #{tpu_custom_call.1} parent=1 // loop_footer
      %s16 = sadd.s32 1, %s12
    $region7: #{tpu_custom_call.1} parent=1 // loop_footer_branch
      %11 = sbr.rel target = $region3
    $region8: #{tpu_custom_call.1} parent=1 // loop_exit
      _
    %686 = vsyncpa [#allocation3], 1
    %s687 = scalar_lea.sflag [#allocation3], 1
    %688 = vsyncpa %s687, 1

</llo_original>
